<compile_context>
chip_gen: v6e
topology: v6e:2x2x1
jax: 0.10.0
libtpu: 0.0.40
codegen_flags: <defaults>
</compile_context>

<pallas_src>
import functools
import math

import jax
import jax.numpy as jnp
from jax.experimental import pallas as pl
from jax.experimental.pallas import tpu as pltpu


def _cdiv(a, b):
    return -(-a // b)


def _round_up(x, m):
    return _cdiv(x, m) * m


def _num_tensorcores():
    """Best-effort TensorCore-per-chip count (1 on failure / single-TC chips)."""
    try:
        info = pltpu.get_tpu_info()
        for name in ("num_cores", "num_tensorcores", "cores_per_chip",
                     "tensorcores_per_chip", "core_count"):
            v = getattr(info, name, None)
            if isinstance(v, int) and v > 0:
                return v
    except Exception:
        pass
    try:
        v = getattr(jax.devices()[0], "num_cores", None)
        if isinstance(v, int) and v > 0:
            return v
    except Exception:
        pass
    return 1


def _sinpe_kernel(x_ref, sel_ref, o_ref):
    # x_ref:   (TM, Kc)  packed flat indices; column g is 1.0, columns > g are 0
    # sel_ref: (Kc, W)   row j<g: div_term pattern on lane block j (0 elsewhere)
    #                    row g: phase (0 on sin lanes, pi/2 on cos lanes)
    # o_ref:   (TM, W)   lane-dense output, W = g * d_model
    t = jnp.dot(x_ref[...], sel_ref[...],
                preferred_element_type=jnp.float32,
                precision=jax.lax.Precision.HIGHEST)
    # sin(t) on even lanes; sin(t + pi/2) == cos(t) (to f32 rounding) on odd.
    o_ref[...] = jnp.sin(t).astype(o_ref.dtype)


@functools.partial(jax.jit, static_argnames=("d_model", "row_tile", "out_dtype"))
def sinusoidal_positional_embedding(emb_indices, *, d_model, row_tile=4096,
                                    out_dtype=jnp.float32):
    """Pallas implementation of SinusoidalPositionalEmbedding.forward.

    Args:
      emb_indices: (N, K) array (any float/int dtype; cast to float32).
      d_model: embedding dimension D (must be even).
      row_tile: packed output rows processed per grid step (capped by VMEM).
      out_dtype: dtype of the returned embeddings.  float32 matches PyTorch;
        bfloat16 halves output HBM traffic (recommended on v5e if the consumer
        accepts it).

    Returns:
      (N, K, D) embeddings in `out_dtype`.
    """
    assert d_model % 2 == 0, "d_model must be even"
    N, K = emb_indices.shape
    M = N * K
    half = d_model // 2

    # ---- lane packing: fold g consecutive flat rows into one output row ----
    g = 128 // math.gcd(d_model, 128)        # smallest g with g*D % 128 == 0
    if g * d_model > 4096:                   # keep sel / row width reasonable
        g = 1
    W = g * d_model
    Kc = _round_up(g + 1, 8)                 # contraction dim (sublane-padded)

    # ---- constants (built once in the wrapper) ----
    div_indices = jnp.arange(0, d_model, 2, dtype=jnp.float32)
    div_term = jnp.exp(div_indices * (-jnp.log(jnp.float32(10000.0)) / d_model))
    div_lane = jnp.tile(jnp.repeat(div_term, 2), g)                      # (W,)
    phase_lane = jnp.tile(
        jnp.tile(jnp.array([0.0, jnp.pi / 2], jnp.float32), half), g)    # (W,)
    group = jnp.arange(W, dtype=jnp.int32) // d_model                    # (W,)
    rows = jnp.arange(Kc, dtype=jnp.int32)[:, None]                      # (Kc,1)
    sel = jnp.where(rows == group[None, :], div_lane[None, :],
                    jnp.float32(0.0))
    sel = jnp.where(rows == g, phase_lane[None, :], sel).astype(jnp.float32)

    # ---- row tiling / VMEM budget ----
    out_itemsize = jnp.dtype(out_dtype).itemsize
    sub = 8 * max(1, 4 // out_itemsize)      # 8 rows for f32, 16 for bf16
    R = _cdiv(M, g)                          # packed output rows needed
    rt = _round_up(min(row_tile, _round_up(max(R, 1), sub)), sub)
    MiB = 1 << 20
    out_row_bytes = W * out_itemsize
    in_row_bytes = _round_up(Kc, 128) * 4    # input rows are lane-padded in VMEM
    max_rt = min((4 * MiB) // out_row_bytes, (4 * MiB) // in_row_bytes)
    max_rt = max(sub, (max_rt // sub) * sub)
    rt = min(rt, max_rt)

    # Multi-TensorCore chips (v7x / megacore): >= 2 steps per core so the final
    # writeback stays overlapped.  Single-TC chips keep a 1-step grid if it fits.
    num_cores = _num_tensorcores()
    if num_cores > 1:
        min_steps = 2 * num_cores
        if R >= min_steps * sub and _cdiv(R, rt) < min_steps:
            rt = max(sub, _round_up(_cdiv(R, min_steps), sub))

    R_pad = _round_up(max(R, 1), rt)
    grid = (R_pad // rt,)

    footprint = (2 * rt * out_row_bytes          # double-buffered output block
                 + 2 * rt * in_row_bytes         # double-buffered (padded) input
                 + 2 * Kc * W * 4)               # sel constant
    vmem_limit = int(max(footprint + 6 * MiB, 20 * MiB))

    # ---- pack inputs: flatten, pad, fold g per row, append 1.0 column ----
    # TODO(synk): for very small d_model (g >= 16) the pad+reshape round-trip
    # adds noticeable input traffic; a masked last-block store would avoid it.
    x = emb_indices.astype(jnp.float32).reshape(-1)
    x = jnp.pad(x, (0, R_pad * g - M)).reshape(R_pad, g)
    x = jnp.concatenate([x, jnp.ones((R_pad, 1), jnp.float32)], axis=1)
    if Kc > g + 1:
        x = jnp.pad(x, ((0, 0), (0, Kc - (g + 1))))

    out = pl.pallas_call(
        _sinpe_kernel,
        out_shape=jax.ShapeDtypeStruct((R_pad, W), out_dtype),
        grid=grid,
        in_specs=[
            pl.BlockSpec((rt, Kc), lambda i: (i, 0)),
            pl.BlockSpec((Kc, W), lambda i: (0, 0)),
        ],
        out_specs=pl.BlockSpec((rt, W), lambda i: (i, 0)),
        compiler_params=pltpu.CompilerParams(
            dimension_semantics=("parallel",),
            vmem_limit_bytes=vmem_limit),
    )(x, sel)

    # (R_pad, g*D) row-major has the same HBM layout as (R_pad*g, D): free.
    return out.reshape(R_pad * g, d_model)[:M].reshape(N, K, d_model)


def _reference(emb_indices, d_model):
    """Pure-JAX mirror of the PyTorch forward (for correctness check)."""
    div_indices = jnp.arange(0, d_model, 2, dtype=jnp.float32)
    div_term = jnp.exp(div_indices * (-jnp.log(jnp.float32(10000.0)) / d_model))
    x = emb_indices.astype(jnp.float32)
    omegas = x.reshape(-1, 1, 1) * div_term.reshape(1, -1, 1)            # (M, D/2, 1)
    emb = jnp.concatenate([jnp.sin(omegas), jnp.cos(omegas)], axis=2)    # (M, D/2, 2)
    return emb.reshape(emb_indices.shape[0], emb_indices.shape[1], d_model)


if __name__ == "__main__":
    d_model = 32
    N, K = 2, 8   # emb_indices: (N', K)

    key = jax.random.PRNGKey(0)
    # Typical usage: emb_indices are (possibly fractional) positions/distances.
    emb_indices = jax.random.uniform(key, (N, K), dtype=jnp.float32,
                                     minval=0.0, maxval=50.0)

    out = sinusoidal_positional_embedding(emb_indices, d_model=d_model)
    out = jax.block_until_ready(out)

    ref = _reference(emb_indices, d_model)
    assert out.shape == (N, K, d_model), out.shape
    # Error budget at |t| <= 50: ~3e-6 from the sin(t+pi/2) argument rounding
    # plus ~5e-6 from the HIGHEST-precision f32 matmul — well inside 5e-5.
    assert jnp.allclose(out, ref, atol=5e-5, rtol=1e-5), "mismatch vs reference"

    print("KERNEL_OK")
</pallas_src>

<mosaic_0001>
module attributes {stable_mosaic.version = 11 : i64} {
  func.func @_sinpe_kernel(%arg0: i32, %arg1: memref<8x8xf32, #tpu.memory_space<vmem>>, %arg2: memref<8x128xf32, #tpu.memory_space<vmem>>, %arg3: memref<8x128xf32, #tpu.memory_space<vmem>>) attributes {dimension_semantics = [#tpu.dimension_semantics<parallel>], iteration_bounds = array<i64: 1>, scalar_prefetch = 0 : i64, scratch_operands = 0 : i64, tpu.core_type = #tpu.core_type<tc>, window_params = [{transform_indices = @transform_0, window_bounds = array<i64: 8, 8>}, {pipeline_mode = #tpu.pipeline_mode<synchronous>, transform_indices = @transform_1, window_bounds = array<i64: 8, 128>}, {transform_indices = @transform_2, window_bounds = array<i64: 8, 128>}]} {
    %c0 = arith.constant 0 : index
    %c0_0 = arith.constant 0 : index
    %0 = vector.load %arg1[%c0, %c0_0] : memref<8x8xf32, #tpu.memory_space<vmem>>, vector<8x8xf32>
    %c0_1 = arith.constant 0 : index
    %c0_2 = arith.constant 0 : index
    %1 = vector.load %arg2[%c0_1, %c0_2] : memref<8x128xf32, #tpu.memory_space<vmem>>, vector<8x128xf32>
    %cst = arith.constant dense<0.000000e+00> : vector<8x128xf32>
    %2 = tpu.matmul %0, %1, %cst {dimension_numbers = #tpu.dot_dimension_numbers<[1], [0], [0], [1], [0, 0, 1, 1], [], []>, precision = #tpu.contract_precision<fp32>} : vector<8x8xf32>, vector<8x128xf32>, vector<8x128xf32> -> vector<8x128xf32>
    %3 = math.sin %2 : vector<8x128xf32>
    %c0_3 = arith.constant 0 : index
    %c0_4 = arith.constant 0 : index
    %4 = vector.load %arg3[%c0_3, %c0_4] : memref<8x128xf32, #tpu.memory_space<vmem>>, vector<8x128xf32>
    tpu.vector_store %arg3[%c0_3, %c0_4], %3 {strides = array<i32>} : memref<8x128xf32, #tpu.memory_space<vmem>>, vector<8x128xf32>,
    return
  }
  func.func @transform_0(%arg0: i32) -> (i32, i32) {
    %c0_i32 = arith.constant 0 : i32
    %c0_i32_0 = arith.constant 0 : i32
    return %arg0, %c0_i32 : i32, i32
  }
  func.func @transform_1(%arg0: i32) -> (i32, i32) {
    %c0_i32 = arith.constant 0 : i32
    %c0_i32_0 = arith.constant 0 : i32
    %c0_i32_1 = arith.constant 0 : i32
    return %c0_i32, %c0_i32_0 : i32, i32
  }
  func.func @transform_2(%arg0: i32) -> (i32, i32) {
    %c0_i32 = arith.constant 0 : i32
    %c0_i32_0 = arith.constant 0 : i32
    return %arg0, %c0_i32 : i32, i32
  }
}

</mosaic_0001>

<llo_original>
// kernel: tile.14
$region0: #{tile.14}
  #allocation0 [shape = 's32[1]{0}', space=sflag, size = 0x4, scoped, tag = 'scoped memory for tile.14']
  %s0 = inlined_call_operand.vmem [shape: f32[32], index: 0, kind: input, shape index: {}]
  %s1 = inlined_call_operand.vmem [shape: f32[4,32], index: 1, kind: output, shape index: {}]
  // Predicated region
  $region2: #{tile.14} parent=0 // pred_check
    _
  $region3: #{tile.14} parent=0 // pred_check_branch
    %3 = sbr.rel (0) target = $region5
  $region4: #{tile.14} parent=0 // pred_region
    _
  $region5: #{tile.14} parent=0 // pred_fallthru
    _
  %v4 = vld [vmem:[%s0] ss:$0 sm:$0xff]
  %5 = vst [vmem:[%s1] sm:$0xf] %v4

// kernel: tile.13
$region0: #{tile.13}
  %s0 = inlined_call_operand.vmem [shape: f32[16,2], index: 0, kind: input, shape index: {}]
  %s1 = inlined_call_operand.vmem [shape: f32[32], index: 1, kind: output, shape index: {}]
  $region1: #{tile.13} parent=0
    #allocation0 [shape = 'u8[4096]{0}', space=vmem, size = 0x1000, scoped, tag = 'scoped mem for output reshape']
    %v2 = vld [vmem:[%s0] sm:$0x1]
    %vm3 = vcmask 15360
    %4 = vst.msk [vmem:[#allocation0] sm:$0x1] %vm3, %v2
    %s5 = scalar_lea.vmem %s0, 15
    %v6 = vld [vmem:[%s5] sm:$0x1]
    %7 = vrot.lane.b32.xlu0 %v6, 30
    %v8 = vpop.permute.xlu0 %7
    %vm9 = vcmask 261360
    %10 = vst.msk [vmem:[#allocation0] sm:$0x1] %vm9, %v8
    %s11 = scalar_lea.vmem %s0, 14
    %v12 = vld [vmem:[%s11] sm:$0x1]
    %13 = vrot.lane.b32.xlu0 %v12, 28
    %v14 = vpop.permute.xlu0 %13
    %vm15 = vcmask 244960
    %16 = vst.msk [vmem:[#allocation0] sm:$0x1] %vm15, %v14
    %s17 = scalar_lea.vmem %s0, 13
    %v18 = vld [vmem:[%s17] sm:$0x1]
    %19 = vrot.lane.b32.xlu0 %v18, 26
    %v20 = vpop.permute.xlu0 %19
    %vm21 = vcmask 228560
    %22 = vst.msk [vmem:[#allocation0] sm:$0x1] %vm21, %v20
    %s23 = scalar_lea.vmem %s0, 12
    %v24 = vld [vmem:[%s23] sm:$0x1]
    %25 = vrot.lane.b32.xlu0 %v24, 24
    %v26 = vpop.permute.xlu0 %25
    %vm27 = vcmask 212160
    %28 = vst.msk [vmem:[#allocation0] sm:$0x1] %vm27, %v26
    %s29 = scalar_lea.vmem %s0, 11
    %v30 = vld [vmem:[%s29] sm:$0x1]
    %31 = vrot.lane.b32.xlu0 %v30, 22
    %v32 = vpop.permute.xlu0 %31
    %vm33 = vcmask 195760
    %34 = vst.msk [vmem:[#allocation0] sm:$0x1] %vm33, %v32
    %s35 = scalar_lea.vmem %s0, 10
    %v36 = vld [vmem:[%s35] sm:$0x1]
    %37 = vrot.lane.b32.xlu0 %v36, 20
    %v38 = vpop.permute.xlu0 %37
    %vm39 = vcmask 179360
    %40 = vst.msk [vmem:[#allocation0] sm:$0x1] %vm39, %v38
    %s41 = scalar_lea.vmem %s0, 9
    %v42 = vld [vmem:[%s41] sm:$0x1]
    %43 = vrot.lane.b32.xlu0 %v42, 18
    %v44 = vpop.permute.xlu0 %43
    %vm45 = vcmask 162960
    %46 = vst.msk [vmem:[#allocation0] sm:$0x1] %vm45, %v44
    %s47 = scalar_lea.vmem %s0, 8
    %v48 = vld [vmem:[%s47] sm:$0x1]
    %49 = vrot.lane.b32.xlu0 %v48, 16
    %v50 = vpop.permute.xlu0 %49
    %vm51 = vcmask 146560
    %52 = vst.msk [vmem:[#allocation0] sm:$0x1] %vm51, %v50
    %s53 = scalar_lea.vmem %s0, 7
    %v54 = vld [vmem:[%s53] sm:$0x1]
    %55 = vrot.lane.b32.xlu0 %v54, 14
    %v56 = vpop.permute.xlu0 %55
    %vm57 = vcmask 130160
    %58 = vst.msk [vmem:[#allocation0] sm:$0x1] %vm57, %v56
    %s59 = scalar_lea.vmem %s0, 6
    %v60 = vld [vmem:[%s59] sm:$0x1]
    %61 = vrot.lane.b32.xlu0 %v60, 12
    %v62 = vpop.permute.xlu0 %61
    %vm63 = vcmask 113760
    %64 = vst.msk [vmem:[#allocation0] sm:$0x1] %vm63, %v62
    %s65 = scalar_lea.vmem %s0, 5
    %v66 = vld [vmem:[%s65] sm:$0x1]
    %67 = vrot.lane.b32.xlu0 %v66, 10
    %v68 = vpop.permute.xlu0 %67
    %vm69 = vcmask 97360
    %70 = vst.msk [vmem:[#allocation0] sm:$0x1] %vm69, %v68
    %s71 = scalar_lea.vmem %s0, 4
    %v72 = vld [vmem:[%s71] sm:$0x1]
    %73 = vrot.lane.b32.xlu0 %v72, 8
    %v74 = vpop.permute.xlu0 %73
    %vm75 = vcmask 80960
    %76 = vst.msk [vmem:[#allocation0] sm:$0x1] %vm75, %v74
    %s77 = scalar_lea.vmem %s0, 3
    %v78 = vld [vmem:[%s77] sm:$0x1]
    %79 = vrot.lane.b32.xlu0 %v78, 6
    %v80 = vpop.permute.xlu0 %79
    %vm81 = vcmask 64560
    %82 = vst.msk [vmem:[#allocation0] sm:$0x1] %vm81, %v80
    %s83 = scalar_lea.vmem %s0, 2
    %v84 = vld [vmem:[%s83] sm:$0x1]
    %85 = vrot.lane.b32.xlu0 %v84, 4
    %v86 = vpop.permute.xlu0 %85
    %vm87 = vcmask 48160
    %88 = vst.msk [vmem:[#allocation0] sm:$0x1] %vm87, %v86
    %s89 = scalar_lea.vmem %s0, 1
    %v90 = vld [vmem:[%s89] sm:$0x1]
    %91 = vrot.lane.b32.xlu0 %v90, 2
    %v92 = vpop.permute.xlu0 %91
    %vm93 = vcmask 31760
    %94 = vst.msk [vmem:[#allocation0] sm:$0x1] %vm93, %v92
    %s96 = sshll.u32 1, 1
    %s97 = ssub.s32 %s96, 1
    %v99 = vld [vmem:[#allocation0] sm:%s97]
    %s100 = sshll.u32 1, 1
    %s101 = ssub.s32 %s100, 1
    %102 = vst [vmem:[%s1] sm:%s101] %v99

// kernel: tile.17
$region0: #{tile.17}
  #allocation0 [shape = 's32[1]{0}', space=sflag, size = 0x4, scoped, tag = 'scoped memory for tile.17']
  %s0 = inlined_call_operand.vmem [shape: f32[2], index: 0, kind: input, shape index: {}]
  %s1 = inlined_call_operand.vmem [shape: f32[16,2], index: 1, kind: output, shape index: {}]
  // Predicated region
  $region2: #{tile.17} parent=0 // pred_check
    _
  $region3: #{tile.17} parent=0 // pred_check_branch
    %3 = sbr.rel (0) target = $region5
  $region4: #{tile.17} parent=0 // pred_region
    _
  $region5: #{tile.17} parent=0 // pred_fallthru
    _
  %v4 = vld [vmem:[%s0] ss:$0 sm:$0xff]
  %5 = vst [vmem:[%s1] sm:$0xff] %v4
  %s6 = scalar_lea.vmem %s1, 8
  %7 = vst [vmem:[%s6] sm:$0xff] %v4

// kernel: sinusoidal_positional_embedding.1
$region0: #{sinusoidal_positional_embedding.1}
  #allocation0 [shape = 'u32[]', space=smem, size = 0x4, offset = 0x4, fixed_abs, tag = 'smem constant byte address 0x4 - core index']
  #allocation1 [shape = 'u32[144,128]{1,0:T(1,128)}', space=vmem, size = 0x12000, scoped, tag = 'internal scratch']
  %s0 = inlined_call_operand.vmem [shape: f32[8,8], index: 0, kind: input, shape index: {}]
  %s1 = inlined_call_operand.vmem [shape: f32[8,128], index: 1, kind: input, shape index: {}]
  %s2 = inlined_call_operand.vmem [shape: f32[8,128], index: 2, kind: output, shape index: {}]
  %s3 = sld [smem:[#allocation0]]
  $region18: #{sinusoidal_positional_embedding.1} parent=0
    _
  %s5 = ssub.s32 1, %s3
  %s6 = scalar_select 0, %s5, %s3
  // Predicated region
  $region2: #{sinusoidal_positional_embedding.1} parent=0 // pred_check
    _
  $region3: #{sinusoidal_positional_embedding.1} parent=0 // pred_check_branch
    %8 = sbr.rel (0) target = $region5
  $region4: #{sinusoidal_positional_embedding.1} parent=0 // pred_region
    _
  $region5: #{sinusoidal_positional_embedding.1} parent=0 // pred_fallthru
    _
  // Predicated region
  $region6: #{sinusoidal_positional_embedding.1} parent=0 // pred_check
    _
  $region7: #{sinusoidal_positional_embedding.1} parent=0 // pred_check_branch
    %10 = sbr.rel (0) target = $region9
  $region8: #{sinusoidal_positional_embedding.1} parent=0 // pred_region
    _
  $region9: #{sinusoidal_positional_embedding.1} parent=0 // pred_fallthru
    _
  %v11 = vld [vmem:[%s0] sm:$0xff]
  %v12 = vld [vmem:[%s1] sm:$0xff]
  %vm13 = vcmask 64512
  %v15 = vsel %vm13, %v11, 0
  %17 = vmatprep.subr.mxu0 0.0
  %18 = vmatpush1.msra.mxu0 0.0
  %19 = vmatprep.subr.mxu0 0.0
  %20 = vmatpush1.msra.mxu0 0.0
  %21 = vmatprep.subr.mxu0 0.0
  %22 = vmatpush1.msra.mxu0 0.0
  %23 = vmatprep.subr.mxu0 0.0
  %24 = vmatpush1.msra.mxu0 0.0
  %25 = vmatprep.subr.mxu0 0.0
  %26 = vmatpush1.msra.mxu0 0.0
  %27 = vmatprep.subr.mxu0 0.0
  %28 = vmatpush1.msra.mxu0 0.0
  %29 = vmatprep.subr.mxu0 0.0
  %30 = vmatpush1.msra.mxu0 0.0
  %31 = vmatprep.subr.mxu0 0.0
  %32 = vmatpush1.msra.mxu0 0.0
  %33 = vmatprep.subr.mxu0 0.0
  %34 = vmatpush1.msra.mxu0 0.0
  %35 = vmatprep.subr.mxu0 0.0
  %36 = vmatpush1.msra.mxu0 0.0
  %37 = vmatprep.subr.mxu0 0.0
  %38 = vmatpush1.msra.mxu0 0.0
  %39 = vmatprep.subr.mxu0 0.0
  %40 = vmatpush1.msra.mxu0 0.0
  %41 = vmatprep.subr.mxu0 0.0
  %42 = vmatpush1.msra.mxu0 0.0
  %43 = vmatprep.subr.mxu0 0.0
  %44 = vmatpush1.msra.mxu0 0.0
  %45 = vmatprep.subr.mxu0 0.0
  %46 = vmatpush1.msra.mxu0 0.0
  %47 = vmatprep.subr.mxu0 0.0
  %v48 = vand.u32 %v12, 4294901760
  %49 = vmatpush1.msra.mxu0 %v48
  %50 = vmatprep.subr.mxu0 0.0
  %51 = vmatpush2.msra.mxu0 0.0
  %52 = vmatprep.subr.mxu0 0.0
  %53 = vmatpush2.msra.mxu0 0.0
  %54 = vmatprep.subr.mxu0 0.0
  %55 = vmatpush2.msra.mxu0 0.0
  %56 = vmatprep.subr.mxu0 0.0
  %57 = vmatpush2.msra.mxu0 0.0
  %58 = vmatprep.subr.mxu0 0.0
  %59 = vmatpush2.msra.mxu0 0.0
  %60 = vmatprep.subr.mxu0 0.0
  %61 = vmatpush2.msra.mxu0 0.0
  %62 = vmatprep.subr.mxu0 0.0
  %63 = vmatpush2.msra.mxu0 0.0
  %64 = vmatprep.subr.mxu0 0.0
  %65 = vmatpush2.msra.mxu0 0.0
  %66 = vmatprep.subr.mxu0 0.0
  %67 = vmatpush2.msra.mxu0 0.0
  %68 = vmatprep.subr.mxu0 0.0
  %69 = vmatpush2.msra.mxu0 0.0
  %70 = vmatprep.subr.mxu0 0.0
  %71 = vmatpush2.msra.mxu0 0.0
  %72 = vmatprep.subr.mxu0 0.0
  %73 = vmatpush2.msra.mxu0 0.0
  %74 = vmatprep.subr.mxu0 0.0
  %75 = vmatpush2.msra.mxu0 0.0
  %76 = vmatprep.subr.mxu0 0.0
  %77 = vmatpush2.msra.mxu0 0.0
  %78 = vmatprep.subr.mxu0 0.0
  %79 = vmatpush2.msra.mxu0 0.0
  %80 = vmatprep.subr.mxu0 0.0
  %81 = vmatpush2.msra.mxu0 0.0
  %82 = vmatprep.mubr.f32.mxu0 0.0
  %v83 = vand.u32 %v15, 4294901760
  %v84 = vsub.f32 %v15, %v83
  %v85 = vand.u32 %v84, 4294901760
  %v86 = vsub.f32 %v84, %v85
  %v87 = vand.u32 %v86, 4294901760
  %88 = vmatmul.mubr.f32.gmra.mxu0 %v87
  %v89 = vpop.f32.mrf.mxu0
  %v90 = vadd.f32 0.0, %v89
  %v91 = vpop.f32.mrf.mxu0
  %92 = vdwg.mxu0
  %93 = vmatprep.subr.mxu0 0.0
  %94 = vmatpush1.msra.mxu0 0.0
  %95 = vmatprep.subr.mxu0 0.0
  %96 = vmatpush1.msra.mxu0 0.0
  %97 = vmatprep.subr.mxu0 0.0
  %98 = vmatpush1.msra.mxu0 0.0
  %99 = vmatprep.subr.mxu0 0.0
  %100 = vmatpush1.msra.mxu0 0.0
  %101 = vmatprep.subr.mxu0 0.0
  %102 = vmatpush1.msra.mxu0 0.0
  %103 = vmatprep.subr.mxu0 0.0
  %104 = vmatpush1.msra.mxu0 0.0
  %105 = vmatprep.subr.mxu0 0.0
  %106 = vmatpush1.msra.mxu0 0.0
  %107 = vmatprep.subr.mxu0 0.0
  %108 = vmatpush1.msra.mxu0 0.0
  %109 = vmatprep.subr.mxu0 0.0
  %110 = vmatpush1.msra.mxu0 0.0
  %111 = vmatprep.subr.mxu0 0.0
  %112 = vmatpush1.msra.mxu0 0.0
  %113 = vmatprep.subr.mxu0 0.0
  %114 = vmatpush1.msra.mxu0 0.0
  %115 = vmatprep.subr.mxu0 0.0
  %116 = vmatpush1.msra.mxu0 0.0
  %117 = vmatprep.subr.mxu0 0.0
  %118 = vmatpush1.msra.mxu0 0.0
  %119 = vmatprep.subr.mxu0 0.0
  %120 = vmatpush1.msra.mxu0 0.0
  %121 = vmatprep.subr.mxu0 0.0
  %122 = vmatpush1.msra.mxu0 0.0
  %123 = vmatprep.subr.mxu0 0.0
  %v124 = vand.u32 %v12, 4294901760
  %v125 = vsub.f32 %v12, %v124
  %v126 = vand.u32 %v125, 4294901760
  %v127 = vsub.f32 %v125, %v126
  %v128 = vand.u32 %v127, 4294901760
  %129 = vmatpush1.msra.mxu0 %v128
  %130 = vmatprep.subr.mxu0 0.0
  %131 = vmatpush2.msra.mxu0 0.0
  %132 = vmatprep.subr.mxu0 0.0
  %133 = vmatpush2.msra.mxu0 0.0
  %134 = vmatprep.subr.mxu0 0.0
  %135 = vmatpush2.msra.mxu0 0.0
  %136 = vmatprep.subr.mxu0 0.0
  %137 = vmatpush2.msra.mxu0 0.0
  %138 = vmatprep.subr.mxu0 0.0
  %139 = vmatpush2.msra.mxu0 0.0
  %140 = vmatprep.subr.mxu0 0.0
  %141 = vmatpush2.msra.mxu0 0.0
  %142 = vmatprep.subr.mxu0 0.0
  %143 = vmatpush2.msra.mxu0 0.0
  %144 = vmatprep.subr.mxu0 0.0
  %145 = vmatpush2.msra.mxu0 0.0
  %146 = vmatprep.subr.mxu0 0.0
  %147 = vmatpush2.msra.mxu0 0.0
  %148 = vmatprep.subr.mxu0 0.0
  %149 = vmatpush2.msra.mxu0 0.0
  %150 = vmatprep.subr.mxu0 0.0
  %151 = vmatpush2.msra.mxu0 0.0
  %152 = vmatprep.subr.mxu0 0.0
  %153 = vmatpush2.msra.mxu0 0.0
  %154 = vmatprep.subr.mxu0 0.0
  %155 = vmatpush2.msra.mxu0 0.0
  %156 = vmatprep.subr.mxu0 0.0
  %157 = vmatpush2.msra.mxu0 0.0
  %158 = vmatprep.subr.mxu0 0.0
  %159 = vmatpush2.msra.mxu0 0.0
  %160 = vmatprep.subr.mxu0 0.0
  %161 = vmatpush2.msra.mxu0 0.0
  %162 = vmatprep.mubr.f32.mxu0 0.0
  %v163 = vand.u32 %v15, 4294901760
  %164 = vmatmul.mubr.f32.gmra.mxu0 %v163
  %v165 = vpop.f32.mrf.mxu0
  %v166 = vadd.f32 %v90, %v165
  %v167 = vpop.f32.mrf.mxu0
  %168 = vdwg.mxu0
  %169 = vmatprep.subr.mxu0 0.0
  %170 = vmatpush1.msra.mxu0 0.0
  %171 = vmatprep.subr.mxu0 0.0
  %172 = vmatpush1.msra.mxu0 0.0
  %173 = vmatprep.subr.mxu0 0.0
  %174 = vmatpush1.msra.mxu0 0.0
  %175 = vmatprep.subr.mxu0 0.0
  %176 = vmatpush1.msra.mxu0 0.0
  %177 = vmatprep.subr.mxu0 0.0
  %178 = vmatpush1.msra.mxu0 0.0
  %179 = vmatprep.subr.mxu0 0.0
  %180 = vmatpush1.msra.mxu0 0.0
  %181 = vmatprep.subr.mxu0 0.0
  %182 = vmatpush1.msra.mxu0 0.0
  %183 = vmatprep.subr.mxu0 0.0
  %184 = vmatpush1.msra.mxu0 0.0
  %185 = vmatprep.subr.mxu0 0.0
  %186 = vmatpush1.msra.mxu0 0.0
  %187 = vmatprep.subr.mxu0 0.0
  %188 = vmatpush1.msra.mxu0 0.0
  %189 = vmatprep.subr.mxu0 0.0
  %190 = vmatpush1.msra.mxu0 0.0
  %191 = vmatprep.subr.mxu0 0.0
  %192 = vmatpush1.msra.mxu0 0.0
  %193 = vmatprep.subr.mxu0 0.0
  %194 = vmatpush1.msra.mxu0 0.0
  %195 = vmatprep.subr.mxu0 0.0
  %196 = vmatpush1.msra.mxu0 0.0
  %197 = vmatprep.subr.mxu0 0.0
  %198 = vmatpush1.msra.mxu0 0.0
  %199 = vmatprep.subr.mxu0 0.0
  %v200 = vand.u32 %v12, 4294901760
  %v201 = vsub.f32 %v12, %v200
  %202 = vmatpush1.msra.mxu0 %v201
  %203 = vmatprep.subr.mxu0 0.0
  %204 = vmatpush2.msra.mxu0 0.0
  %205 = vmatprep.subr.mxu0 0.0
  %206 = vmatpush2.msra.mxu0 0.0
  %207 = vmatprep.subr.mxu0 0.0
  %208 = vmatpush2.msra.mxu0 0.0
  %209 = vmatprep.subr.mxu0 0.0
  %210 = vmatpush2.msra.mxu0 0.0
  %211 = vmatprep.subr.mxu0 0.0
  %212 = vmatpush2.msra.mxu0 0.0
  %213 = vmatprep.subr.mxu0 0.0
  %214 = vmatpush2.msra.mxu0 0.0
  %215 = vmatprep.subr.mxu0 0.0
  %216 = vmatpush2.msra.mxu0 0.0
  %217 = vmatprep.subr.mxu0 0.0
  %218 = vmatpush2.msra.mxu0 0.0
  %219 = vmatprep.subr.mxu0 0.0
  %220 = vmatpush2.msra.mxu0 0.0
  %221 = vmatprep.subr.mxu0 0.0
  %222 = vmatpush2.msra.mxu0 0.0
  %223 = vmatprep.subr.mxu0 0.0
  %224 = vmatpush2.msra.mxu0 0.0
  %225 = vmatprep.subr.mxu0 0.0
  %226 = vmatpush2.msra.mxu0 0.0
  %227 = vmatprep.subr.mxu0 0.0
  %228 = vmatpush2.msra.mxu0 0.0
  %229 = vmatprep.subr.mxu0 0.0
  %230 = vmatpush2.msra.mxu0 0.0
  %231 = vmatprep.subr.mxu0 0.0
  %232 = vmatpush2.msra.mxu0 0.0
  %233 = vmatprep.subr.mxu0 0.0
  %234 = vmatpush2.msra.mxu0 0.0
  %235 = vmatprep.mubr.f32.mxu0 0.0
  %v236 = vand.u32 %v15, 4294901760
  %v237 = vsub.f32 %v15, %v236
  %238 = vmatmul.mubr.f32.gmra.mxu0 %v237
  %v239 = vpop.f32.mrf.mxu0
  %v240 = vadd.f32 %v166, %v239
  %v241 = vpop.f32.mrf.mxu0
  %242 = vdwg.mxu0
  %243 = vmatprep.subr.mxu0 0.0
  %244 = vmatpush1.msra.mxu0 0.0
  %245 = vmatprep.subr.mxu0 0.0
  %246 = vmatpush1.msra.mxu0 0.0
  %247 = vmatprep.subr.mxu0 0.0
  %248 = vmatpush1.msra.mxu0 0.0
  %249 = vmatprep.subr.mxu0 0.0
  %250 = vmatpush1.msra.mxu0 0.0
  %251 = vmatprep.subr.mxu0 0.0
  %252 = vmatpush1.msra.mxu0 0.0
  %253 = vmatprep.subr.mxu0 0.0
  %254 = vmatpush1.msra.mxu0 0.0
  %255 = vmatprep.subr.mxu0 0.0
  %256 = vmatpush1.msra.mxu0 0.0
  %257 = vmatprep.subr.mxu0 0.0
  %258 = vmatpush1.msra.mxu0 0.0
  %259 = vmatprep.subr.mxu0 0.0
  %260 = vmatpush1.msra.mxu0 0.0
  %261 = vmatprep.subr.mxu0 0.0
  %262 = vmatpush1.msra.mxu0 0.0
  %263 = vmatprep.subr.mxu0 0.0
  %264 = vmatpush1.msra.mxu0 0.0
  %265 = vmatprep.subr.mxu0 0.0
  %266 = vmatpush1.msra.mxu0 0.0
  %267 = vmatprep.subr.mxu0 0.0
  %268 = vmatpush1.msra.mxu0 0.0
  %269 = vmatprep.subr.mxu0 0.0
  %270 = vmatpush1.msra.mxu0 0.0
  %271 = vmatprep.subr.mxu0 0.0
  %272 = vmatpush1.msra.mxu0 0.0
  %273 = vmatprep.subr.mxu0 0.0
  %v274 = vand.u32 %v12, 4294901760
  %275 = vmatpush1.msra.mxu0 %v274
  %276 = vmatprep.subr.mxu0 0.0
  %277 = vmatpush2.msra.mxu0 0.0
  %278 = vmatprep.subr.mxu0 0.0
  %279 = vmatpush2.msra.mxu0 0.0
  %280 = vmatprep.subr.mxu0 0.0
  %281 = vmatpush2.msra.mxu0 0.0
  %282 = vmatprep.subr.mxu0 0.0
  %283 = vmatpush2.msra.mxu0 0.0
  %284 = vmatprep.subr.mxu0 0.0
  %285 = vmatpush2.msra.mxu0 0.0
  %286 = vmatprep.subr.mxu0 0.0
  %287 = vmatpush2.msra.mxu0 0.0
  %288 = vmatprep.subr.mxu0 0.0
  %289 = vmatpush2.msra.mxu0 0.0
  %290 = vmatprep.subr.mxu0 0.0
  %291 = vmatpush2.msra.mxu0 0.0
  %292 = vmatprep.subr.mxu0 0.0
  %293 = vmatpush2.msra.mxu0 0.0
  %294 = vmatprep.subr.mxu0 0.0
  %295 = vmatpush2.msra.mxu0 0.0
  %296 = vmatprep.subr.mxu0 0.0
  %297 = vmatpush2.msra.mxu0 0.0
  %298 = vmatprep.subr.mxu0 0.0
  %299 = vmatpush2.msra.mxu0 0.0
  %300 = vmatprep.subr.mxu0 0.0
  %301 = vmatpush2.msra.mxu0 0.0
  %302 = vmatprep.subr.mxu0 0.0
  %303 = vmatpush2.msra.mxu0 0.0
  %304 = vmatprep.subr.mxu0 0.0
  %305 = vmatpush2.msra.mxu0 0.0
  %306 = vmatprep.subr.mxu0 0.0
  %307 = vmatpush2.msra.mxu0 0.0
  %308 = vmatprep.mubr.f32.mxu0 0.0
  %v309 = vand.u32 %v15, 4294901760
  %v310 = vsub.f32 %v15, %v309
  %v311 = vand.u32 %v310, 4294901760
  %312 = vmatmul.mubr.f32.gmra.mxu0 %v311
  %v313 = vpop.f32.mrf.mxu0
  %v314 = vadd.f32 %v240, %v313
  %v315 = vpop.f32.mrf.mxu0
  %316 = vdwg.mxu0
  %317 = vmatprep.subr.mxu0 0.0
  %318 = vmatpush1.msra.mxu0 0.0
  %319 = vmatprep.subr.mxu0 0.0
  %320 = vmatpush1.msra.mxu0 0.0
  %321 = vmatprep.subr.mxu0 0.0
  %322 = vmatpush1.msra.mxu0 0.0
  %323 = vmatprep.subr.mxu0 0.0
  %324 = vmatpush1.msra.mxu0 0.0
  %325 = vmatprep.subr.mxu0 0.0
  %326 = vmatpush1.msra.mxu0 0.0
  %327 = vmatprep.subr.mxu0 0.0
  %328 = vmatpush1.msra.mxu0 0.0
  %329 = vmatprep.subr.mxu0 0.0
  %330 = vmatpush1.msra.mxu0 0.0
  %331 = vmatprep.subr.mxu0 0.0
  %332 = vmatpush1.msra.mxu0 0.0
  %333 = vmatprep.subr.mxu0 0.0
  %334 = vmatpush1.msra.mxu0 0.0
  %335 = vmatprep.subr.mxu0 0.0
  %336 = vmatpush1.msra.mxu0 0.0
  %337 = vmatprep.subr.mxu0 0.0
  %338 = vmatpush1.msra.mxu0 0.0
  %339 = vmatprep.subr.mxu0 0.0
  %340 = vmatpush1.msra.mxu0 0.0
  %341 = vmatprep.subr.mxu0 0.0
  %342 = vmatpush1.msra.mxu0 0.0
  %343 = vmatprep.subr.mxu0 0.0
  %344 = vmatpush1.msra.mxu0 0.0
  %345 = vmatprep.subr.mxu0 0.0
  %346 = vmatpush1.msra.mxu0 0.0
  %347 = vmatprep.subr.mxu0 0.0
  %v348 = vand.u32 %v12, 4294901760
  %v349 = vsub.f32 %v12, %v348
  %v350 = vand.u32 %v349, 4294901760
  %351 = vmatpush1.msra.mxu0 %v350
  %352 = vmatprep.subr.mxu0 0.0
  %353 = vmatpush2.msra.mxu0 0.0
  %354 = vmatprep.subr.mxu0 0.0
  %355 = vmatpush2.msra.mxu0 0.0
  %356 = vmatprep.subr.mxu0 0.0
  %357 = vmatpush2.msra.mxu0 0.0
  %358 = vmatprep.subr.mxu0 0.0
  %359 = vmatpush2.msra.mxu0 0.0
  %360 = vmatprep.subr.mxu0 0.0
  %361 = vmatpush2.msra.mxu0 0.0
  %362 = vmatprep.subr.mxu0 0.0
  %363 = vmatpush2.msra.mxu0 0.0
  %364 = vmatprep.subr.mxu0 0.0
  %365 = vmatpush2.msra.mxu0 0.0
  %366 = vmatprep.subr.mxu0 0.0
  %367 = vmatpush2.msra.mxu0 0.0
  %368 = vmatprep.subr.mxu0 0.0
  %369 = vmatpush2.msra.mxu0 0.0
  %370 = vmatprep.subr.mxu0 0.0
  %371 = vmatpush2.msra.mxu0 0.0
  %372 = vmatprep.subr.mxu0 0.0
  %373 = vmatpush2.msra.mxu0 0.0
  %374 = vmatprep.subr.mxu0 0.0
  %375 = vmatpush2.msra.mxu0 0.0
  %376 = vmatprep.subr.mxu0 0.0
  %377 = vmatpush2.msra.mxu0 0.0
  %378 = vmatprep.subr.mxu0 0.0
  %379 = vmatpush2.msra.mxu0 0.0
  %380 = vmatprep.subr.mxu0 0.0
  %381 = vmatpush2.msra.mxu0 0.0
  %382 = vmatprep.subr.mxu0 0.0
  %383 = vmatpush2.msra.mxu0 0.0
  %384 = vmatprep.mubr.f32.mxu0 0.0
  %v385 = vand.u32 %v15, 4294901760
  %386 = vmatmul.mubr.f32.gmra.mxu0 %v385
  %v387 = vpop.f32.mrf.mxu0
  %v388 = vadd.f32 %v314, %v387
  %v389 = vpop.f32.mrf.mxu0
  %390 = vdwg.mxu0
  %391 = vmatprep.subr.mxu0 0.0
  %392 = vmatpush1.msra.mxu0 0.0
  %393 = vmatprep.subr.mxu0 0.0
  %394 = vmatpush1.msra.mxu0 0.0
  %395 = vmatprep.subr.mxu0 0.0
  %396 = vmatpush1.msra.mxu0 0.0
  %397 = vmatprep.subr.mxu0 0.0
  %398 = vmatpush1.msra.mxu0 0.0
  %399 = vmatprep.subr.mxu0 0.0
  %400 = vmatpush1.msra.mxu0 0.0
  %401 = vmatprep.subr.mxu0 0.0
  %402 = vmatpush1.msra.mxu0 0.0
  %403 = vmatprep.subr.mxu0 0.0
  %404 = vmatpush1.msra.mxu0 0.0
  %405 = vmatprep.subr.mxu0 0.0
  %406 = vmatpush1.msra.mxu0 0.0
  %407 = vmatprep.subr.mxu0 0.0
  %408 = vmatpush1.msra.mxu0 0.0
  %409 = vmatprep.subr.mxu0 0.0
  %410 = vmatpush1.msra.mxu0 0.0
  %411 = vmatprep.subr.mxu0 0.0
  %412 = vmatpush1.msra.mxu0 0.0
  %413 = vmatprep.subr.mxu0 0.0
  %414 = vmatpush1.msra.mxu0 0.0
  %415 = vmatprep.subr.mxu0 0.0
  %416 = vmatpush1.msra.mxu0 0.0
  %417 = vmatprep.subr.mxu0 0.0
  %418 = vmatpush1.msra.mxu0 0.0
  %419 = vmatprep.subr.mxu0 0.0
  %420 = vmatpush1.msra.mxu0 0.0
  %421 = vmatprep.subr.mxu0 0.0
  %v422 = vand.u32 %v12, 4294901760
  %423 = vmatpush1.msra.mxu0 %v422
  %424 = vmatprep.subr.mxu0 0.0
  %425 = vmatpush2.msra.mxu0 0.0
  %426 = vmatprep.subr.mxu0 0.0
  %427 = vmatpush2.msra.mxu0 0.0
  %428 = vmatprep.subr.mxu0 0.0
  %429 = vmatpush2.msra.mxu0 0.0
  %430 = vmatprep.subr.mxu0 0.0
  %431 = vmatpush2.msra.mxu0 0.0
  %432 = vmatprep.subr.mxu0 0.0
  %433 = vmatpush2.msra.mxu0 0.0
  %434 = vmatprep.subr.mxu0 0.0
  %435 = vmatpush2.msra.mxu0 0.0
  %436 = vmatprep.subr.mxu0 0.0
  %437 = vmatpush2.msra.mxu0 0.0
  %438 = vmatprep.subr.mxu0 0.0
  %439 = vmatpush2.msra.mxu0 0.0
  %440 = vmatprep.subr.mxu0 0.0
  %441 = vmatpush2.msra.mxu0 0.0
  %442 = vmatprep.subr.mxu0 0.0
  %443 = vmatpush2.msra.mxu0 0.0
  %444 = vmatprep.subr.mxu0 0.0
  %445 = vmatpush2.msra.mxu0 0.0
  %446 = vmatprep.subr.mxu0 0.0
  %447 = vmatpush2.msra.mxu0 0.0
  %448 = vmatprep.subr.mxu0 0.0
  %449 = vmatpush2.msra.mxu0 0.0
  %450 = vmatprep.subr.mxu0 0.0
  %451 = vmatpush2.msra.mxu0 0.0
  %452 = vmatprep.subr.mxu0 0.0
  %453 = vmatpush2.msra.mxu0 0.0
  %454 = vmatprep.subr.mxu0 0.0
  %455 = vmatpush2.msra.mxu0 0.0
  %456 = vmatprep.mubr.f32.mxu0 0.0
  %v457 = vand.u32 %v15, 4294901760
  %458 = vmatmul.mubr.f32.gmra.mxu0 %v457
  %v459 = vpop.f32.mrf.mxu0
  %v460 = vadd.f32 %v388, %v459
  %v461 = vpop.f32.mrf.mxu0
  %462 = vdwg.mxu0
  %v463 = vand.u32 2147483647, %v460
  %vm464 = vcmp.le.f32.partialorder %v463, 0.7853982
  %vm465 = vcmp.lt.s32.totalorder %v460, 0
  %v466 = vand.u32 %v460, 2139095040
  %v467 = vshrl.u32 %v466, 23
  %v468 = vsub.s32 %v467, 127
  %v469 = vand.u32 2147483647, %v460
  %v470 = vand.u32 %v469, 8388607
  %v471 = vor.u32 %v470, 8388608
  %v472 = vsub.s32 0, %v471
  %v473 = vadd.s32 %v468, 1
  %vm474 = vcmp.gt.s32.totalorder %v473, 0
  %v475 = vsel %vm474, %v473, 0
  %v476 = vshrl.u32 %v475, 5
  %v477 = vand.u32 %v475, 31
  %v478 = vsub.s32 32, %v477
  %v479 = vshrl.u32 683565275, %v478
  %v480 = vshll.u32 683565275, %v477
  %v481 = vshrl.u32 2475754826, %v478
  %v482 = vor.u32 %v480, %v481
  %v483 = vshll.u32 2475754826, %v477
  %v484 = vshrl.u32 2131351028, %v478
  %v485 = vor.u32 %v483, %v484
  %v486 = vshll.u32 2131351028, %v477
  %v487 = vshrl.u32 2102212464, %v478
  %v488 = vor.u32 %v486, %v487
  %v489 = vshll.u32 2102212464, %v477
  %v490 = vshrl.u32 920167782, %v478
  %v491 = vor.u32 %v489, %v490
  %v492 = vshll.u32 920167782, %v477
  %v493 = vshrl.u32 1326507024, %v478
  %v494 = vor.u32 %v492, %v493
  %vm495 = vcmp.lt.s32.totalorder %v476, 1
  %vm496 = vcmp.lt.s32.totalorder %v476, 2
  %vm497 = vcmp.lt.s32.totalorder %v476, 3
  %vm498 = vcmp.lt.s32.totalorder %v476, 4
  %v499 = vsel %vm495, %v479, %v482
  %v500 = vsel %vm498, %v488, 2102212464
  %v501 = vsel %vm497, %v485, %v500
  %v502 = vsel %vm496, %v499, %v501
  %v503 = vsel %vm495, %v482, %v485
  %v504 = vsel %vm498, %v491, 920167782
  %v505 = vsel %vm497, %v488, %v504
  %v506 = vsel %vm496, %v503, %v505
  %v507 = vsel %vm495, %v485, %v488
  %v508 = vsel %vm498, %v494, 1326507024
  %v509 = vsel %vm497, %v491, %v508
  %v510 = vsel %vm496, %v507, %v509
  %v511 = vshll.u32 %v471, 8
  %v512 = vmul.u32.u64.compose %v511, %v510
  %v513 = vextract.low.u32 %v512
  %v514 = vextract.high.u32 %v512
  %v515 = vmul.u32.u64.compose %v511, %v506
  %v516 = vextract.low.u32 %v515
  %v517 = vextract.high.u32 %v515
  %v518 = vmul.u32 %v511, %v502
  %v519 = vadd.s32 %v514, %v516
  %vm520 = vc.u32 %v514, %v516
  %v521 = vadd.s32 %v517, 1
  %v522 = vsel %vm520, %v521, %v517
  %v523 = vadd.s32 %v518, %v522
  %v524 = vadd.s32 %v523, 536870912
  %v525 = vshrl.u32 %v524, 30
  %v526 = vshll.u32 %v525, 30
  %v527 = vsub.s32 %v523, %v526
  %vm528 = vcmp.lt.s32.totalorder %v527, 0
  %v529 = vsub.s32 0, %v527
  %v530 = vsel %vm528, %v529, %v527
  %v531 = vclz %v530
  %v532 = vsub.s32 %v531, 2
  %vm533 = vcmp.gt.s32.totalorder 0, %v532
  %v534 = vsel %vm533, 0, %v532
  %v535 = vsub.s32 32, %v534
  %v536 = vshll.u32 %v527, %v534
  %v537 = vshrl.u32 %v519, %v535
  %v538 = vor.u32 %v536, %v537
  %v539 = vsub.s32 4294967266, %v534
  %v540 = vadd.s32 %v539, 127
  %v541 = vshll.u32 %v540, 23
  %v542 = vor.u32 4788187, %v541
  %v543 = vand.u32 2147483647, %v542
  %v545 = vcvt.s32.f32 %v538
  %v546 = vmul.f32 %v545, %v543
  %v547 = vxor.u32 %v546, 2147483648
  %v548 = vsel %vm465, %v547, %v546
  %v549 = vsub.s32 4, %v525
  %v550 = vsel %vm465, %v549, %v525
  %v551 = vsel %vm464, %v460, %v548
  %v552 = vsel %vm464, 0, %v550
  %v553 = vcosq.f32.pop %v551
  %v554 = vsinq.f32.pop %v551
  %vm555 = vweird.f32 %v460
  %v556 = vadd.s32 %v552, 3
  %v557 = vand.u32 %v556, 3
  %vm558 = vcmp.lt.s32.totalorder %v557, 2
  %vm559 = vcmp.eq.s32.totalorder %v557, 0
  %v560 = vxor.u32 %v554, 2147483648
  %v561 = vsel %vm559, %v553, %v560
  %vm562 = vcmp.eq.s32.totalorder %v557, 2
  %v563 = vxor.u32 %v553, 2147483648
  %v564 = vsel %vm562, %v563, %v554
  %v565 = vsel %vm558, %v561, %v564
  %v566 = vsel %vm555, nan, %v565
  %567 = vst [vmem:[%s2] sm:$0xff] %v566
  // Predicated region
  $region10: #{sinusoidal_positional_embedding.1} parent=0 // pred_check
    _
  $region11: #{sinusoidal_positional_embedding.1} parent=0 // pred_check_branch
    %569 = sbr.rel (0) target = $region13
  $region12: #{sinusoidal_positional_embedding.1} parent=0 // pred_region
    _
  $region13: #{sinusoidal_positional_embedding.1} parent=0 // pred_fallthru
    _
  // Predicated region
  $region14: #{sinusoidal_positional_embedding.1} parent=0 // pred_check
    _
  $region15: #{sinusoidal_positional_embedding.1} parent=0 // pred_check_branch
    %571 = sbr.rel (0) target = $region17
  $region16: #{sinusoidal_positional_embedding.1} parent=0 // pred_region
    _
  $region17: #{sinusoidal_positional_embedding.1} parent=0 // pred_fallthru
    _

</llo_original>
